<compile_context>
chip_gen: v7x
topology: tpu7x:2x2x1
jax: 0.10.0
libtpu: 0.0.40
codegen_flags: <defaults>
</compile_context>

<pallas_src>
import functools

import jax
import jax.numpy as jnp
from jax import lax
from jax.experimental import pallas as pl
from jax.experimental.pallas import tpu as pltpu


def _cross_attn_kernel(x_ref, k_ref, v_ref, wq_ref, wo_ref, bo_ref,
                       out_ref, o_acc_ref, *, heads, dim_head, scale,
                       compute_dtype):
    cdt = compute_dtype
    exact = jnp.dtype(cdt) == jnp.dtype(jnp.float32)

    x = x_ref[...]      # (tq, Dq)    already compute_dtype
    k = k_ref[...]      # (M,  H*dh)  already compute_dtype (pre-projected)
    v = v_ref[...]      # (M,  H*dh)  already compute_dtype (pre-projected)
    wq = wq_ref[...]    # (Dq, H*dh)  already compute_dtype
    wo = wo_ref[...]    # (H*dh, Dq)  already compute_dtype

    # Fused, lane-dense Q projection across ALL heads (f32 accumulation);
    # softmax scale folded into q (cheaper than scaling the (tq, M) logits).
    q = jnp.dot(x, wq, preferred_element_type=jnp.float32)    # (tq, H*dh)
    q = (q * scale).astype(cdt)

    dh = dim_head
    # Static head loop (heads is a small Python int).  Per-head outputs go
    # straight into a preallocated f32 VMEM slab, bounding live ranges and
    # giving the output projection a clean lane-dense operand.
    for h in range(heads):
        qh = q[:, h * dh:(h + 1) * dh]   # (tq, dh)
        kh = k[:, h * dh:(h + 1) * dh]   # (M,  dh)
        vh = v[:, h * dh:(h + 1) * dh]   # (M,  dh)

        # Logits + softmax statistics in f32 (matches _ATTN_PRECISION == 'fp32').
        sim = lax.dot_general(qh, kh, (((1,), (1,)), ((), ())),
                              preferred_element_type=jnp.float32)  # (tq, M)
        m = jnp.max(sim, axis=-1, keepdims=True)
        p = jnp.exp(sim - m)                         # f32, EUP
        l = jnp.sum(p, axis=-1, keepdims=True)       # (tq, 1)

        o_h = jnp.dot(p.astype(cdt), vh,
                      preferred_element_type=jnp.float32)          # (tq, dh)
        # Deferred normalization: (tq, dh) multiply instead of (tq, M) divide.
        o_acc_ref[:, h * dh:(h + 1) * dh] = o_h * pl.reciprocal(l, approx=not exact)

    # Single wide output projection (contraction = H*dh) + f32 bias.
    out = jnp.dot(o_acc_ref[...].astype(cdt), wo,
                  preferred_element_type=jnp.float32)
    out = out + bo_ref[...]
    out_ref[...] = out.astype(out_ref.dtype)


def _round_up(x, m):
    return ((x + m - 1) // m) * m


def _choose_q_tile(n, target):
    """Return (tq, n_padded) with tq dividing n_padded.

    Prefers MXU-friendly multiples of 128.  If N has no suitable divisor the
    caller pads N up to a tile multiple (tiling is never silently disabled).
    """
    target = max(8, int(target))
    if n <= target:
        tq = _round_up(n, 8)
        return tq, tq
    # Largest multiple of 128 <= target that divides n.
    t = (target // 128) * 128
    while t >= 128:
        if n % t == 0:
            return t, n
        t -= 128
    # Any multiple of 8 <= target that divides n.
    t = (target // 8) * 8
    while t >= 8:
        if n % t == 0:
            return t, n
        t -= 8
    # Fall back to padding N up to a tile multiple.
    tq = 128 if target >= 128 else max(8, (target // 8) * 8)
    return tq, _round_up(n, tq)


def cross_attention(x, context=None, params=None, *, heads, dim_head,
                    compute_dtype=jnp.bfloat16, q_tile_target=256):
    """Fused multi-head cross attention.

    x:       (B, N, Dq)
    context: (B, M, Dc) or None (defaults to x)
    params:  fused weights (y = x @ W orientation):
             wq (Dq, H*dh), wk (Dc, H*dh), wv (Dc, H*dh), wo (H*dh, Dq), bo (Dq,)
    """
    if context is None:
        context = x
    B, N, Dq = x.shape
    Bc, M, Dc = context.shape
    assert Bc == B
    HD = heads * dim_head
    assert params["wq"].shape == (Dq, HD)
    assert params["wk"].shape == (Dc, HD)
    assert params["wv"].shape == (Dc, HD)
    assert params["wo"].shape == (HD, Dq)
    scale = float(dim_head) ** -0.5
    cdt = jnp.dtype(compute_dtype)

    tq, n_pad = _choose_q_tile(N, q_tile_target)
    n_q_tiles = n_pad // tq

    # ---- Host-side (XLA) preprocessing -------------------------------------
    # K/V projections computed ONCE per batch (not per q-tile) as batched
    # matmuls; all large operands fed to the kernel already in compute_dtype.
    x_c = x.astype(cdt)
    ctx_c = context.astype(cdt)
    k = jnp.einsum("bmc,ce->bme", ctx_c, params["wk"].astype(cdt),
                   preferred_element_type=jnp.float32).astype(cdt)   # (B, M, HD)
    v = jnp.einsum("bmc,ce->bme", ctx_c, params["wv"].astype(cdt),
                   preferred_element_type=jnp.float32).astype(cdt)   # (B, M, HD)
    wq_c = params["wq"].astype(cdt)
    wo_c = params["wo"].astype(cdt)
    bo = params["bo"].astype(jnp.float32).reshape(1, Dq)             # bias stays f32

    if n_pad != N:
        x_c = jnp.pad(x_c, ((0, 0), (0, n_pad - N), (0, 0)))

    kernel = functools.partial(_cross_attn_kernel, heads=heads,
                               dim_head=dim_head, scale=scale,
                               compute_dtype=cdt)

    # ---- VMEM budget (double-buffered tiles + intermediates), per-gen cap. --
    f32b, cb = 4, cdt.itemsize
    outb = jnp.dtype(x.dtype).itemsize
    tile_io = tq * Dq * cb + 2 * M * HD * cb + tq * Dq * outb    # x, k, v, out
    weights = 2 * Dq * HD * cb + Dq * f32b                       # wq, wo, bo
    interm = (tq * HD * (f32b + cb)        # q (f32 acc + cdt copy)
              + 3 * tq * M * f32b          # sim / p (headroom for overlap)
              + tq * M * cb                # p cast copy
              + tq * HD * (f32b + cb)      # scratch slab + cdt copy
              + tq * Dq * f32b)            # f32 out before final cast
    vmem_est = 2 * (tile_io + weights) + interm + (4 << 20)
    try:
        vmem_cap = int(pltpu.get_tpu_info().vmem_capacity_bytes) * 3 // 4
    except Exception:  # conservative, v7x-safe fallback
        vmem_cap = 48 << 20
    vmem_limit = int(min(max(vmem_est, 32 << 20), vmem_cap))

    # ---- Advisory cost estimate for the XLA scheduler (kernel work only). ---
    flops = 2 * B * n_pad * HD * (2 * Dq + 2 * M)
    bytes_accessed = (B * n_pad * Dq * cb            # x
                      + 2 * B * M * HD * cb          # k, v
                      + 2 * Dq * HD * cb + Dq * f32b # weights + bias
                      + B * n_pad * Dq * outb)       # output
    cost = pl.CostEstimate(flops=int(flops),
                           transcendentals=int(B * heads * n_pad * M),
                           bytes_accessed=int(bytes_accessed))

    out = pl.pallas_call(
        kernel,
        out_shape=jax.ShapeDtypeStruct((B, n_pad, Dq), x.dtype),
        grid_spec=pltpu.PrefetchScalarGridSpec(
            num_scalar_prefetch=0,
            grid=(B, n_q_tiles),
            in_specs=[
                pl.BlockSpec((None, tq, Dq), lambda b, t: (b, t, 0)),  # x tile
                pl.BlockSpec((None, M, HD), lambda b, t: (b, 0, 0)),   # k (pre-projected)
                pl.BlockSpec((None, M, HD), lambda b, t: (b, 0, 0)),   # v (pre-projected)
                pl.BlockSpec((Dq, HD), lambda b, t: (0, 0)),           # Wq (fused heads)
                pl.BlockSpec((HD, Dq), lambda b, t: (0, 0)),           # Wout (fused heads)
                pl.BlockSpec((1, Dq), lambda b, t: (0, 0)),            # out bias (f32)
            ],
            out_specs=pl.BlockSpec((None, tq, Dq), lambda b, t: (b, t, 0)),
            scratch_shapes=[pltpu.VMEM((tq, HD), jnp.float32)],
        ),
        compiler_params=pltpu.CompilerParams(
            dimension_semantics=("parallel", "parallel"),
            vmem_limit_bytes=vmem_limit),
        cost_estimate=cost,
    )(x_c, k, v, wq_c, wo_c, bo)

    if n_pad != N:
        out = out[:, :N, :]
    return out


def cross_attention_ref(x, context, params, *, heads, dim_head):
    """Pure-JAX fp32 reference mirroring the PyTorch forward (no mask, eval dropout)."""
    B, N, Dq = x.shape
    _, M, Dc = context.shape
    H, dh = heads, dim_head
    scale = float(dh) ** -0.5

    q = x @ params["wq"]          # (B, N, H*dh)
    k = context @ params["wk"]    # (B, M, H*dh)
    v = context @ params["wv"]    # (B, M, H*dh)

    def split(t, L):
        return t.reshape(B, L, H, dh).transpose(0, 2, 1, 3)  # (B, H, L, dh)

    q, k, v = split(q, N), split(k, M), split(v, M)
    sim = jnp.einsum("bhid,bhjd->bhij", q, k) * scale
    attn = jax.nn.softmax(sim, axis=-1)
    out = jnp.einsum("bhij,bhjd->bhid", attn, v)              # (B, H, N, dh)
    out = out.transpose(0, 2, 1, 3).reshape(B, N, H * dh)     # (B, N, inner)
    return out @ params["wo"] + params["bo"]


if __name__ == "__main__":
    # Small shapes consistent with the module (cross attention: N != M, Dq != Dc).
    B, N, M = 2, 64, 24
    query_dim, context_dim = 32, 24
    heads, dim_head = 2, 16
    inner_dim = heads * dim_head

    key = jax.random.PRNGKey(0)
    kx, kc, k1, k2, k3, k4, k5 = jax.random.split(key, 7)

    x = jax.random.normal(kx, (B, N, query_dim), dtype=jnp.float32)
    context = jax.random.normal(kc, (B, M, context_dim), dtype=jnp.float32)

    # Effective (already-transposed) fused weights: y = x @ W.
    params = {
        "wq": 0.1 * jax.random.normal(k1, (query_dim, inner_dim), jnp.float32),
        "wk": 0.1 * jax.random.normal(k2, (context_dim, inner_dim), jnp.float32),
        "wv": 0.1 * jax.random.normal(k3, (context_dim, inner_dim), jnp.float32),
        "wo": 0.1 * jax.random.normal(k4, (inner_dim, query_dim), jnp.float32),
        "bo": 0.1 * jax.random.normal(k5, (query_dim,), jnp.float32),
    }

    ref = cross_attention_ref(x, context, params, heads=heads, dim_head=dim_head)

    # 1) Exact fp32 compute path (matches _ATTN_PRECISION == 'fp32'), with the
    #    query-tile grid axis exercised (tq=32 -> 2 q-tiles).
    out_f32 = cross_attention(x, context, params, heads=heads, dim_head=dim_head,
                              compute_dtype=jnp.float32, q_tile_target=32)
    out_f32 = jax.block_until_ready(out_f32)
    assert out_f32.shape == (B, N, query_dim)
    assert jnp.allclose(out_f32, ref, atol=1e-4, rtol=1e-4), "fp32 path mismatch"

    # 2) Default fast path: bf16 MXU inputs / f32 accumulation (softmax stats f32).
    out_bf16 = cross_attention(x, context, params, heads=heads, dim_head=dim_head)
    out_bf16 = jax.block_until_ready(out_bf16)
    assert out_bf16.shape == (B, N, query_dim)
    assert jnp.allclose(out_bf16, ref, atol=3e-2, rtol=3e-2), "bf16 path mismatch"

    # 3) Awkward N exercises the wrapper-side query padding path (N=20, tq=16).
    x3 = x[:1, :20]
    ref3 = cross_attention_ref(x3, context[:1], params, heads=heads, dim_head=dim_head)
    out3 = cross_attention(x3, context[:1], params, heads=heads, dim_head=dim_head,
                           compute_dtype=jnp.float32, q_tile_target=16)
    out3 = jax.block_until_ready(out3)
    assert out3.shape == (1, 20, query_dim)
    assert jnp.allclose(out3, ref3, atol=1e-4, rtol=1e-4), "padded path mismatch"

    print("KERNEL_OK")
</pallas_src>

<mosaic_0001>
module attributes {stable_mosaic.version = 11 : i64} {
  func.func @_cross_attn_kernel(%arg0: i32, %arg1: i32, %arg2: memref<1x32x32xf32, #tpu.memory_space<vmem>>, %arg3: memref<1x24x32xf32, #tpu.memory_space<vmem>>, %arg4: memref<1x24x32xf32, #tpu.memory_space<vmem>>, %arg5: memref<32x32xf32, #tpu.memory_space<vmem>>, %arg6: memref<32x32xf32, #tpu.memory_space<vmem>>, %arg7: memref<1x32xf32, #tpu.memory_space<vmem>>, %arg8: memref<1x32x32xf32, #tpu.memory_space<vmem>>, %arg9: memref<32x32xf32, #tpu.memory_space<vmem>>) attributes {dimension_semantics = [#tpu.dimension_semantics<parallel>, #tpu.dimension_semantics<parallel>], iteration_bounds = array<i64: 2, 2>, scalar_prefetch = 0 : i64, scratch_operands = 1 : i64, tpu.core_type = #tpu.core_type<tc>, window_params = [{transform_indices = @transform_0, window_bounds = array<i64: 1, 32, 32>}, {transform_indices = @transform_1, window_bounds = array<i64: 1, 24, 32>}, {transform_indices = @transform_2, window_bounds = array<i64: 1, 24, 32>}, {pipeline_mode = #tpu.pipeline_mode<synchronous>, transform_indices = @transform_3, window_bounds = array<i64: 32, 32>}, {pipeline_mode = #tpu.pipeline_mode<synchronous>, transform_indices = @transform_4, window_bounds = array<i64: 32, 32>}, {pipeline_mode = #tpu.pipeline_mode<synchronous>, transform_indices = @transform_5, window_bounds = array<i64: 1, 32>}, {transform_indices = @transform_6, window_bounds = array<i64: 1, 32, 32>}]} {
    %c0 = arith.constant 0 : index
    %c0_0 = arith.constant 0 : index
    %c0_1 = arith.constant 0 : index
    %0 = vector.load %arg2[%c0, %c0_0, %c0_1] : memref<1x32x32xf32, #tpu.memory_space<vmem>>, vector<1x32x32xf32>
    %1 = vector.shape_cast %0 : vector<1x32x32xf32> to vector<32x32xf32>
    %c0_2 = arith.constant 0 : index
    %c0_3 = arith.constant 0 : index
    %c0_4 = arith.constant 0 : index
    %2 = vector.load %arg3[%c0_2, %c0_3, %c0_4] : memref<1x24x32xf32, #tpu.memory_space<vmem>>, vector<1x24x32xf32>
    %3 = vector.shape_cast %2 : vector<1x24x32xf32> to vector<24x32xf32>
    %c0_5 = arith.constant 0 : index
    %c0_6 = arith.constant 0 : index
    %c0_7 = arith.constant 0 : index
    %4 = vector.load %arg4[%c0_5, %c0_6, %c0_7] : memref<1x24x32xf32, #tpu.memory_space<vmem>>, vector<1x24x32xf32>
    %5 = vector.shape_cast %4 : vector<1x24x32xf32> to vector<24x32xf32>
    %c0_8 = arith.constant 0 : index
    %c0_9 = arith.constant 0 : index
    %6 = vector.load %arg5[%c0_8, %c0_9] : memref<32x32xf32, #tpu.memory_space<vmem>>, vector<32x32xf32>
    %c0_10 = arith.constant 0 : index
    %c0_11 = arith.constant 0 : index
    %7 = vector.load %arg6[%c0_10, %c0_11] : memref<32x32xf32, #tpu.memory_space<vmem>>, vector<32x32xf32>
    %cst = arith.constant dense<0.000000e+00> : vector<32x32xf32>
    %8 = tpu.matmul %1, %6, %cst {dimension_numbers = #tpu.dot_dimension_numbers<[1], [0], [0], [1], [0, 0, 1, 1], [], []>} : vector<32x32xf32>, vector<32x32xf32>, vector<32x32xf32> -> vector<32x32xf32>
    %cst_12 = arith.constant 2.500000e-01 : f32
    %9 = vector.broadcast %cst_12 : f32 to vector<32x32xf32>
    %10 = arith.mulf %8, %9 : vector<32x32xf32>
    %11 = vector.extract_strided_slice %10 {offsets = [0, 0], sizes = [32, 16], strides = [1, 1]} : vector<32x32xf32> to vector<32x16xf32>
    %12 = vector.extract_strided_slice %3 {offsets = [0, 0], sizes = [24, 16], strides = [1, 1]} : vector<24x32xf32> to vector<24x16xf32>
    %13 = vector.extract_strided_slice %5 {offsets = [0, 0], sizes = [24, 16], strides = [1, 1]} : vector<24x32xf32> to vector<24x16xf32>
    %cst_13 = arith.constant dense<0.000000e+00> : vector<32x24xf32>
    %14 = tpu.matmul %11, %12, %cst_13 {dimension_numbers = #tpu.dot_dimension_numbers<[1], [1], [0], [0], [0, 0, 1, 0], [], []>} : vector<32x16xf32>, vector<24x16xf32>, vector<32x24xf32> -> vector<32x24xf32>
    %cst_14 = arith.constant dense<0xFF800000> : vector<32xf32>
    %15 = vector.multi_reduction <maximumf>, %14, %cst_14 [1] : vector<32x24xf32> to vector<32xf32>
    %16 = vector.shape_cast %15 : vector<32xf32> to vector<32x1xf32>
    %17 = vector.broadcast %16 : vector<32x1xf32> to vector<32x24xf32>
    %18 = arith.subf %14, %17 : vector<32x24xf32>
    %19 = math.exp %18 : vector<32x24xf32>
    %cst_15 = arith.constant dense<0.000000e+00> : vector<32xf32>
    %20 = vector.multi_reduction <add>, %19, %cst_15 [1] : vector<32x24xf32> to vector<32xf32>
    %21 = vector.shape_cast %20 : vector<32xf32> to vector<32x1xf32>
    %cst_16 = arith.constant dense<0.000000e+00> : vector<32x16xf32>
    %22 = tpu.matmul %19, %13, %cst_16 {dimension_numbers = #tpu.dot_dimension_numbers<[1], [0], [0], [1], [0, 0, 1, 1], [], []>} : vector<32x24xf32>, vector<24x16xf32>, vector<32x16xf32> -> vector<32x16xf32>
    %23 = tpu.reciprocal %21 : vector<32x1xf32> -> vector<32x1xf32>
    %24 = vector.broadcast %23 : vector<32x1xf32> to vector<32x16xf32>
    %25 = arith.mulf %22, %24 : vector<32x16xf32>
    %c0_17 = arith.constant 0 : index
    %c0_18 = arith.constant 0 : index
    %26 = vector.load %arg9[%c0_17, %c0_18] : memref<32x32xf32, #tpu.memory_space<vmem>>, vector<32x16xf32>
    tpu.vector_store %arg9[%c0_17, %c0_18], %25 {strides = array<i32>} : memref<32x32xf32, #tpu.memory_space<vmem>>, vector<32x16xf32>,
    %27 = vector.extract_strided_slice %10 {offsets = [0, 16], sizes = [32, 16], strides = [1, 1]} : vector<32x32xf32> to vector<32x16xf32>
    %28 = vector.extract_strided_slice %3 {offsets = [0, 16], sizes = [24, 16], strides = [1, 1]} : vector<24x32xf32> to vector<24x16xf32>
    %29 = vector.extract_strided_slice %5 {offsets = [0, 16], sizes = [24, 16], strides = [1, 1]} : vector<24x32xf32> to vector<24x16xf32>
    %cst_19 = arith.constant dense<0.000000e+00> : vector<32x24xf32>
    %30 = tpu.matmul %27, %28, %cst_19 {dimension_numbers = #tpu.dot_dimension_numbers<[1], [1], [0], [0], [0, 0, 1, 0], [], []>} : vector<32x16xf32>, vector<24x16xf32>, vector<32x24xf32> -> vector<32x24xf32>
    %cst_20 = arith.constant dense<0xFF800000> : vector<32xf32>
    %31 = vector.multi_reduction <maximumf>, %30, %cst_20 [1] : vector<32x24xf32> to vector<32xf32>
    %32 = vector.shape_cast %31 : vector<32xf32> to vector<32x1xf32>
    %33 = vector.broadcast %32 : vector<32x1xf32> to vector<32x24xf32>
    %34 = arith.subf %30, %33 : vector<32x24xf32>
    %35 = math.exp %34 : vector<32x24xf32>
    %cst_21 = arith.constant dense<0.000000e+00> : vector<32xf32>
    %36 = vector.multi_reduction <add>, %35, %cst_21 [1] : vector<32x24xf32> to vector<32xf32>
    %37 = vector.shape_cast %36 : vector<32xf32> to vector<32x1xf32>
    %cst_22 = arith.constant dense<0.000000e+00> : vector<32x16xf32>
    %38 = tpu.matmul %35, %29, %cst_22 {dimension_numbers = #tpu.dot_dimension_numbers<[1], [0], [0], [1], [0, 0, 1, 1], [], []>} : vector<32x24xf32>, vector<24x16xf32>, vector<32x16xf32> -> vector<32x16xf32>
    %39 = tpu.reciprocal %37 : vector<32x1xf32> -> vector<32x1xf32>
    %40 = vector.broadcast %39 : vector<32x1xf32> to vector<32x16xf32>
    %41 = arith.mulf %38, %40 : vector<32x16xf32>
    %c0_23 = arith.constant 0 : index
    %c16 = arith.constant 16 : index
    %42 = vector.load %arg9[%c0_23, %c16] : memref<32x32xf32, #tpu.memory_space<vmem>>, vector<32x16xf32>
    tpu.vector_store %arg9[%c0_23, %c16], %41 {strides = array<i32>} : memref<32x32xf32, #tpu.memory_space<vmem>>, vector<32x16xf32>,
    %c0_24 = arith.constant 0 : index
    %c0_25 = arith.constant 0 : index
    %43 = vector.load %arg9[%c0_24, %c0_25] : memref<32x32xf32, #tpu.memory_space<vmem>>, vector<32x32xf32>
    %cst_26 = arith.constant dense<0.000000e+00> : vector<32x32xf32>
    %44 = tpu.matmul %43, %7, %cst_26 {dimension_numbers = #tpu.dot_dimension_numbers<[1], [0], [0], [1], [0, 0, 1, 1], [], []>} : vector<32x32xf32>, vector<32x32xf32>, vector<32x32xf32> -> vector<32x32xf32>
    %c0_27 = arith.constant 0 : index
    %c0_28 = arith.constant 0 : index
    %45 = vector.load %arg7[%c0_27, %c0_28] : memref<1x32xf32, #tpu.memory_space<vmem>>, vector<1x32xf32>
    %46 = vector.broadcast %45 : vector<1x32xf32> to vector<32x32xf32>
    %47 = arith.addf %44, %46 : vector<32x32xf32>
    %c0_29 = arith.constant 0 : index
    %c0_30 = arith.constant 0 : index
    %c0_31 = arith.constant 0 : index
    %48 = vector.load %arg8[%c0_29, %c0_30, %c0_31] : memref<1x32x32xf32, #tpu.memory_space<vmem>>, vector<1x32x32xf32>
    %49 = vector.shape_cast %48 : vector<1x32x32xf32> to vector<32x32xf32>
    %50 = vector.shape_cast %47 : vector<32x32xf32> to vector<1x32x32xf32>
    tpu.vector_store %arg8[%c0_29, %c0_30, %c0_31], %50 {strides = array<i32>} : memref<1x32x32xf32, #tpu.memory_space<vmem>>, vector<1x32x32xf32>,
    return
  }
  func.func @transform_0(%arg0: i32, %arg1: i32) -> (i32, i32, i32) {
    %c0_i32 = arith.constant 0 : i32
    %c0_i32_0 = arith.constant 0 : i32
    return %arg0, %arg1, %c0_i32 : i32, i32, i32
  }
  func.func @transform_1(%arg0: i32, %arg1: i32) -> (i32, i32, i32) {
    %c0_i32 = arith.constant 0 : i32
    %c0_i32_0 = arith.constant 0 : i32
    %c0_i32_1 = arith.constant 0 : i32
    return %arg0, %c0_i32, %c0_i32_0 : i32, i32, i32
  }
  func.func @transform_2(%arg0: i32, %arg1: i32) -> (i32, i32, i32) {
    %c0_i32 = arith.constant 0 : i32
    %c0_i32_0 = arith.constant 0 : i32
    %c0_i32_1 = arith.constant 0 : i32
    return %arg0, %c0_i32, %c0_i32_0 : i32, i32, i32
  }
  func.func @transform_3(%arg0: i32, %arg1: i32) -> (i32, i32) {
    %c0_i32 = arith.constant 0 : i32
    %c0_i32_0 = arith.constant 0 : i32
    %c0_i32_1 = arith.constant 0 : i32
    return %c0_i32, %c0_i32_0 : i32, i32
  }
  func.func @transform_4(%arg0: i32, %arg1: i32) -> (i32, i32) {
    %c0_i32 = arith.constant 0 : i32
    %c0_i32_0 = arith.constant 0 : i32
    %c0_i32_1 = arith.constant 0 : i32
    return %c0_i32, %c0_i32_0 : i32, i32
  }
  func.func @transform_5(%arg0: i32, %arg1: i32) -> (i32, i32) {
    %c0_i32 = arith.constant 0 : i32
    %c0_i32_0 = arith.constant 0 : i32
    %c0_i32_1 = arith.constant 0 : i32
    return %c0_i32, %c0_i32_0 : i32, i32
  }
  func.func @transform_6(%arg0: i32, %arg1: i32) -> (i32, i32, i32) {
    %c0_i32 = arith.constant 0 : i32
    %c0_i32_0 = arith.constant 0 : i32
    return %arg0, %arg1, %c0_i32 : i32, i32, i32
  }
}

</mosaic_0001>

<llo_original>
// kernel: tpu_custom_call.1
$region0: #{tpu_custom_call.1}
  #allocation0 [shape = 'u32[]', space=smem, size = 0x4, offset = 0x4, fixed_abs, tag = 'smem constant byte address 0x4 - core index']
  #allocation1 [shape = 'u32[144,128]{1,0:T(1,128)}', space=vmem, size = 0x12000, scoped, tag = 'internal scratch']
  #allocation2 [shape = 'f32[32,32]{1,0:T(8,128)}', space=vmem, size = 0x4000, scoped, tag = 'scratch operand']
  %s0 = inlined_call_operand.vmem [shape: f32[2,64,32], index: 0, kind: input, shape index: {}]
  %s1 = inlined_call_operand.vmem [shape: f32[2,24,32], index: 1, kind: input, shape index: {}]
  %s2 = inlined_call_operand.vmem [shape: f32[2,24,32], index: 2, kind: input, shape index: {}]
  %s3 = inlined_call_operand.vmem [shape: f32[32,32], index: 3, kind: input, shape index: {}]
  %s4 = inlined_call_operand.vmem [shape: f32[32,32], index: 4, kind: input, shape index: {}]
  %s5 = inlined_call_operand.vmem [shape: f32[1,32], index: 5, kind: input, shape index: {}]
  %s6 = inlined_call_operand.vmem [shape: f32[2,64,32], index: 6, kind: output, shape index: {}]
  %s7 = sld [smem:[#allocation0]]
  $region57: #{tpu_custom_call.1} parent=0
    _
  %s9 = ssub.s32 1, %s7
  %s10 = scalar_select 0, %s9, %s7
  loop: start=0, step=1, limit=6
  $region2: #{tpu_custom_call.1} parent=0 // loop_pre_header
    _
  $region3: #{tpu_custom_call.1} parent=0 // loop_header
    %s12 = sphi 0, %s16
    %p13 = scmp.ge.s32.totalorder %s12, 6
    %s19 = sphi 0, %s31
    %s20 = sphi 0, %s27
    %s21 = sphi 0, %s19
    %s22 = sphi 0, %s20
    %s23 = sphi 0, %s21
    %s24 = sphi 0, %s22
    %s36 = sphi 0, %s38
    %s39 = sphi 0, %s36
    %s40 = sphi 0, %s39
    %s56 = sphi 0, %s40
    %s62 = sphi 0, %s64
    %s65 = sphi 0, %s62
    %s66 = sphi 0, %s65
    %s82 = sphi 0, %s66
    %s88 = sphi 0, %s90
    %s91 = sphi 0, %s88
    %s92 = sphi 0, %s91
    %s108 = sphi 0, %s92
    %s112 = sphi 0, %s112
    %s114 = sphi 0, %s112
    %s115 = sphi 0, %s114
    %s129 = sphi 0, %s115
    %s133 = sphi 0, %s133
    %s135 = sphi 0, %s133
    %s136 = sphi 0, %s135
    %s150 = sphi 0, %s136
    %s154 = sphi 0, %s154
    %s156 = sphi 0, %s154
    %s157 = sphi 0, %s156
    %s171 = sphi 0, %s157
    %s179 = sphi 0, %s181
    %s182 = sphi 0, %s179
    %s183 = sphi 0, %s182
    %s199 = sphi 0, %s183
  $region4: #{tpu_custom_call.1} parent=0 // loop_header_branch
    %15 = sbr.rel (%p13) target = $region8
  $region5: #{tpu_custom_call.1} parent=0 // loop_body
    %s17 = ssub.s32 %s12, 1
    %s18 = ssub.s32 %s12, 2
    %s25 = sadd.s32 1, %s20
    %p26 = scmp.ge.s32.totalorder %s25, 2
    %s27 = scalar_select %p26, 0, %s25
    %s28 = sadd.s32 1, %s19
    %s29 = scalar_select %p26, %s28, %s19
    %p30 = scmp.ge.s32.totalorder %s29, 2
    %s31 = scalar_select %p30, 0, %s29
    %s32 = ssub.s32 %s19, %s31
    %s33 = ssub.s32 %s20, %s27
    %s34 = sor.u32 %s32, %s33
    %p35 = scmp.eq.s32.totalorder %s34, 0
    %s37 = sadd.s32 %s36, 1
    %s38 = scalar_select %p35, %s36, %s37
    %p41 = pneg %p35
    %p42 = scmp.eq.s32.totalorder %s12, 3
    %p43 = por %p41, %p42
    %p44 = scmp.ne.s32.totalorder %s36, %s39
    %p45 = scmp.eq.s32.totalorder %s12, 0
    %p46 = por %p44, %p45
    %p47 = scmp.ne.s32.totalorder %s36, %s39
    %p48 = scmp.eq.s32.totalorder %s17, 3
    %p49 = por %p47, %p48
    %p50 = scmp.ne.s32.totalorder %s39, %s40
    %p51 = scmp.eq.s32.totalorder %s17, 0
    %p52 = por %p50, %p51
    %p53 = scmp.ne.s32.totalorder %s39, %s40
    %p54 = scmp.eq.s32.totalorder %s18, 3
    %p55 = por %p53, %p54
    %p57 = scmp.ne.s32.totalorder %s40, %s56
    %p58 = scmp.eq.s32.totalorder %s18, 0
    %p59 = por %p57, %p58
    %s60 = ssub.s32 %s19, %s31
    %p61 = scmp.eq.s32.totalorder %s60, 0
    %s63 = sadd.s32 %s62, 1
    %s64 = scalar_select %p61, %s62, %s63
    %p67 = pneg %p61
    %p68 = scmp.eq.s32.totalorder %s12, 3
    %p69 = por %p67, %p68
    %p70 = scmp.ne.s32.totalorder %s62, %s65
    %p71 = scmp.eq.s32.totalorder %s12, 0
    %p72 = por %p70, %p71
    %p73 = scmp.ne.s32.totalorder %s62, %s65
    %p74 = scmp.eq.s32.totalorder %s17, 3
    %p75 = por %p73, %p74
    %p76 = scmp.ne.s32.totalorder %s65, %s66
    %p77 = scmp.eq.s32.totalorder %s17, 0
    %p78 = por %p76, %p77
    %p79 = scmp.ne.s32.totalorder %s65, %s66
    %p80 = scmp.eq.s32.totalorder %s18, 3
    %p81 = por %p79, %p80
    %p83 = scmp.ne.s32.totalorder %s66, %s82
    %p84 = scmp.eq.s32.totalorder %s18, 0
    %p85 = por %p83, %p84
    %s86 = ssub.s32 %s19, %s31
    %p87 = scmp.eq.s32.totalorder %s86, 0
    %s89 = sadd.s32 %s88, 1
    %s90 = scalar_select %p87, %s88, %s89
    %p93 = pneg %p87
    %p94 = scmp.eq.s32.totalorder %s12, 3
    %p95 = por %p93, %p94
    %p96 = scmp.ne.s32.totalorder %s88, %s91
    %p97 = scmp.eq.s32.totalorder %s12, 0
    %p98 = por %p96, %p97
    %p99 = scmp.ne.s32.totalorder %s88, %s91
    %p100 = scmp.eq.s32.totalorder %s17, 3
    %p101 = por %p99, %p100
    %p102 = scmp.ne.s32.totalorder %s91, %s92
    %p103 = scmp.eq.s32.totalorder %s17, 0
    %p104 = por %p102, %p103
    %p105 = scmp.ne.s32.totalorder %s91, %s92
    %p106 = scmp.eq.s32.totalorder %s18, 3
    %p107 = por %p105, %p106
    %p109 = scmp.ne.s32.totalorder %s92, %s108
    %p110 = scmp.eq.s32.totalorder %s18, 0
    %p111 = por %p109, %p110
    %s113 = sadd.s32 %s112, 1
    %p116 = scmp.eq.s32.totalorder %s12, 3
    %p117 = scmp.ne.s32.totalorder %s112, %s114
    %p118 = scmp.eq.s32.totalorder %s12, 0
    %p119 = por %p117, %p118
    %p120 = scmp.ne.s32.totalorder %s112, %s114
    %p121 = scmp.eq.s32.totalorder %s17, 3
    %p122 = por %p120, %p121
    %p123 = scmp.ne.s32.totalorder %s114, %s115
    %p124 = scmp.eq.s32.totalorder %s17, 0
    %p125 = por %p123, %p124
    %p126 = scmp.ne.s32.totalorder %s114, %s115
    %p127 = scmp.eq.s32.totalorder %s18, 3
    %p128 = por %p126, %p127
    %p130 = scmp.ne.s32.totalorder %s115, %s129
    %p131 = scmp.eq.s32.totalorder %s18, 0
    %p132 = por %p130, %p131
    %s134 = sadd.s32 %s133, 1
    %p137 = scmp.eq.s32.totalorder %s12, 3
    %p138 = scmp.ne.s32.totalorder %s133, %s135
    %p139 = scmp.eq.s32.totalorder %s12, 0
    %p140 = por %p138, %p139
    %p141 = scmp.ne.s32.totalorder %s133, %s135
    %p142 = scmp.eq.s32.totalorder %s17, 3
    %p143 = por %p141, %p142
    %p144 = scmp.ne.s32.totalorder %s135, %s136
    %p145 = scmp.eq.s32.totalorder %s17, 0
    %p146 = por %p144, %p145
    %p147 = scmp.ne.s32.totalorder %s135, %s136
    %p148 = scmp.eq.s32.totalorder %s18, 3
    %p149 = por %p147, %p148
    %p151 = scmp.ne.s32.totalorder %s136, %s150
    %p152 = scmp.eq.s32.totalorder %s18, 0
    %p153 = por %p151, %p152
    %s155 = sadd.s32 %s154, 1
    %p158 = scmp.eq.s32.totalorder %s12, 3
    %p159 = scmp.ne.s32.totalorder %s154, %s156
    %p160 = scmp.eq.s32.totalorder %s12, 0
    %p161 = por %p159, %p160
    %p162 = scmp.ne.s32.totalorder %s154, %s156
    %p163 = scmp.eq.s32.totalorder %s17, 3
    %p164 = por %p162, %p163
    %p165 = scmp.ne.s32.totalorder %s156, %s157
    %p166 = scmp.eq.s32.totalorder %s17, 0
    %p167 = por %p165, %p166
    %p168 = scmp.ne.s32.totalorder %s156, %s157
    %p169 = scmp.eq.s32.totalorder %s18, 3
    %p170 = por %p168, %p169
    %p172 = scmp.ne.s32.totalorder %s157, %s171
    %p173 = scmp.eq.s32.totalorder %s18, 0
    %p174 = por %p172, %p173
    %s175 = ssub.s32 %s19, %s31
    %s176 = ssub.s32 %s20, %s27
    %s177 = sor.u32 %s175, %s176
    %p178 = scmp.eq.s32.totalorder %s177, 0
    %s180 = sadd.s32 %s179, 1
    %s181 = scalar_select %p178, %s179, %s180
    %p184 = pneg %p178
    %p185 = scmp.eq.s32.totalorder %s12, 3
    %p186 = por %p184, %p185
    %p187 = scmp.ne.s32.totalorder %s179, %s182
    %p188 = scmp.eq.s32.totalorder %s12, 0
    %p189 = por %p187, %p188
    %p190 = scmp.ne.s32.totalorder %s179, %s182
    %p191 = scmp.eq.s32.totalorder %s17, 3
    %p192 = por %p190, %p191
    %p193 = scmp.ne.s32.totalorder %s182, %s183
    %p194 = scmp.eq.s32.totalorder %s17, 0
    %p195 = por %p193, %p194
    %p196 = scmp.ne.s32.totalorder %s182, %s183
    %p197 = scmp.eq.s32.totalorder %s18, 3
    %p198 = por %p196, %p197
    %p200 = scmp.ne.s32.totalorder %s183, %s199
    %p201 = scmp.eq.s32.totalorder %s18, 0
    %p202 = por %p200, %p201
    %p203 = scmp.le.s32.totalorder 1, %s12
    %p204 = scmp.lt.s32.totalorder %s12, 5
    %p205 = pnand %p203, %p204
    %p206 = pneg %p205
    // Predicated region
    $region9: #{tpu_custom_call.1} parent=5 // pred_check
      _
    $region10: #{tpu_custom_call.1} parent=5 // pred_check_branch
      %208 = sbr.rel (%p205) target = $region12
    $region11: #{tpu_custom_call.1} parent=5 // pred_region
      %s209 = ssub.s32 %s12, 1
      // Predicated region
      $region13: #{tpu_custom_call.1} parent=11 // pred_check
        %p210 = pneg %p125
      $region14: #{tpu_custom_call.1} parent=11 // pred_check_branch
        %212 = sbr.rel (%p210) target = $region16
      $region15: #{tpu_custom_call.1} parent=11 // pred_region
        _
      $region16: #{tpu_custom_call.1} parent=11 // pred_fallthru
        _
      // Predicated region
      $region17: #{tpu_custom_call.1} parent=11 // pred_check
        %p213 = pneg %p146
      $region18: #{tpu_custom_call.1} parent=11 // pred_check_branch
        %215 = sbr.rel (%p213) target = $region20
      $region19: #{tpu_custom_call.1} parent=11 // pred_region
        _
      $region20: #{tpu_custom_call.1} parent=11 // pred_fallthru
        _
      // Predicated region
      $region21: #{tpu_custom_call.1} parent=11 // pred_check
        %p216 = pneg %p167
      $region22: #{tpu_custom_call.1} parent=11 // pred_check_branch
        %218 = sbr.rel (%p216) target = $region24
      $region23: #{tpu_custom_call.1} parent=11 // pred_region
        _
      $region24: #{tpu_custom_call.1} parent=11 // pred_fallthru
        _
    $region12: #{tpu_custom_call.1} parent=5 // pred_fallthru
      _
    %p219 = scmp.lt.s32.totalorder %s12, 4
    // Predicated region
    $region25: #{tpu_custom_call.1} parent=5 // pred_check
      %p220 = pneg %p219
    $region26: #{tpu_custom_call.1} parent=5 // pred_check_branch
      %222 = sbr.rel (%p220) target = $region28
    $region27: #{tpu_custom_call.1} parent=5 // pred_region
      // Predicated region
      $region29: #{tpu_custom_call.1} parent=27 // pred_check
        %p223 = pneg %p46
      $region30: #{tpu_custom_call.1} parent=27 // pred_check_branch
        %225 = sbr.rel (%p223) target = $region32
      $region31: #{tpu_custom_call.1} parent=27 // pred_region
        %s226 = smul.u32 4, %s20
        %p227 = scmp.lt.s32.totalorder %s19, 1
        %s228 = scalar_select %p227, %s19, 1
        %p229 = scmp.lt.s32.totalorder %s226, 7
        %s230 = scalar_select %p229, %s226, 7
        %s231 = smul.addr %s228, 8
        %s232 = sadd.s32 %s230, %s231
        %s233 = smul.addr %s232, 8
        %s234 = scalar_lea.vmem %s0, %s233
        %s235 = smul.u32 4, %s20
      $region32: #{tpu_custom_call.1} parent=27 // pred_fallthru
        _
      // Predicated region
      $region33: #{tpu_custom_call.1} parent=27 // pred_check
        %p236 = pneg %p72
      $region34: #{tpu_custom_call.1} parent=27 // pred_check_branch
        %238 = sbr.rel (%p236) target = $region36
      $region35: #{tpu_custom_call.1} parent=27 // pred_region
        %p239 = scmp.lt.s32.totalorder %s19, 1
        %s240 = scalar_select %p239, %s19, 1
        %s241 = smul.addr %s240, 3
        %s242 = smul.addr %s241, 8
        %s243 = scalar_lea.vmem %s1, %s242
      $region36: #{tpu_custom_call.1} parent=27 // pred_fallthru
        _
      // Predicated region
      $region37: #{tpu_custom_call.1} parent=27 // pred_check
        %p244 = pneg %p98
      $region38: #{tpu_custom_call.1} parent=27 // pred_check_branch
        %246 = sbr.rel (%p244) target = $region40
      $region39: #{tpu_custom_call.1} parent=27 // pred_region
        %p247 = scmp.lt.s32.totalorder %s19, 1
        %s248 = scalar_select %p247, %s19, 1
        %s249 = smul.addr %s248, 3
        %s250 = smul.addr %s249, 8
        %s251 = scalar_lea.vmem %s2, %s250
      $region40: #{tpu_custom_call.1} parent=27 // pred_fallthru
        _
    $region28: #{tpu_custom_call.1} parent=5 // pred_fallthru
      _
    %p252 = scmp.le.s32.totalorder 1, %s12
    %p253 = scmp.lt.s32.totalorder %s12, 5
    %p254 = pnand %p252, %p253
    %p255 = pneg %p254
    // Predicated region
    $region41: #{tpu_custom_call.1} parent=5 // pred_check
      _
    $region42: #{tpu_custom_call.1} parent=5 // pred_check_branch
      %257 = sbr.rel (%p254) target = $region44
    $region43: #{tpu_custom_call.1} parent=5 // pred_region
      %s258 = ssub.s32 %s12, 1
      %s259 = smul.u32 4, %s22
      %p260 = scmp.lt.s32.totalorder %s21, 1
      %s261 = scalar_select %p260, %s21, 1
      %p262 = scmp.lt.s32.totalorder %s259, 7
      %s263 = scalar_select %p262, %s259, 7
      %s264 = smul.addr %s261, 8
      %s265 = sadd.s32 %s263, %s264
      %s266 = smul.addr %s265, 8
      %s267 = scalar_lea.vmem %s0, %s266
      %p268 = pneg %p52
      %p269 = pneg %p49
      %p270 = scmp.lt.s32.totalorder %s21, 1
      %s271 = scalar_select %p270, %s21, 1
      %s272 = smul.addr %s271, 3
      %s273 = smul.addr %s272, 8
      %s274 = scalar_lea.vmem %s1, %s273
      %p275 = pneg %p78
      %p276 = pneg %p75
      %p277 = scmp.lt.s32.totalorder %s21, 1
      %s278 = scalar_select %p277, %s21, 1
      %s279 = smul.addr %s278, 3
      %s280 = smul.addr %s279, 8
      %s281 = scalar_lea.vmem %s2, %s280
      %p282 = pneg %p104
      %p283 = pneg %p101
      %p284 = pneg %p125
      %p285 = pneg %p122
      %p286 = pneg %p146
      %p287 = pneg %p143
      %p288 = pneg %p167
      %p289 = pneg %p164
      %p290 = pneg %p195
      %p291 = pneg %p192
      %s292 = smul.u32 4, %s22
      %p293 = scmp.lt.s32.totalorder %s21, 1
      %s294 = scalar_select %p293, %s21, 1
      %p295 = scmp.lt.s32.totalorder %s292, 7
      %s296 = scalar_select %p295, %s292, 7
      %s297 = smul.addr %s294, 8
      %s298 = sadd.s32 %s296, %s297
      %s299 = smul.addr %s298, 8
      %s300 = scalar_lea.vmem %s6, %s299
      %s301 = smul.u32 4, %s22
      %p302 = scmp.lt.s32.totalorder %s21, 1
      %s303 = scalar_select %p302, %s21, 1
      %p304 = scmp.lt.s32.totalorder %s301, 7
      %s305 = scalar_select %p304, %s301, 7
      %s306 = smul.addr %s303, 8
      %s307 = sadd.s32 %s305, %s306
      %s308 = smul.addr %s307, 8
      %s309 = scalar_lea.vmem %s0, %s308
      %s310 = smul.u32 4, %s22
      %p311 = scmp.lt.s32.totalorder %s21, 1
      %s312 = scalar_select %p311, %s21, 1
      %s313 = smul.addr %s312, 3
      %s314 = smul.addr %s313, 8
      %s315 = scalar_lea.vmem %s1, %s314
      %p316 = scmp.lt.s32.totalorder %s21, 1
      %s317 = scalar_select %p316, %s21, 1
      %s318 = smul.addr %s317, 3
      %s319 = smul.addr %s318, 8
      %s320 = scalar_lea.vmem %s2, %s319
      %s321 = smul.u32 4, %s22
      %p322 = scmp.lt.s32.totalorder %s21, 1
      %s323 = scalar_select %p322, %s21, 1
      %p324 = scmp.lt.s32.totalorder %s321, 7
      %s325 = scalar_select %p324, %s321, 7
      %s326 = smul.addr %s323, 8
      %s327 = sadd.s32 %s325, %s326
      %s328 = smul.addr %s327, 8
      %s329 = scalar_lea.vmem %s6, %s328
      %s330 = smul.u32 4, %s22
      %v331 = vld [vmem:[%s309] sm:$0xff]
      %v332 = vld [vmem:[%s309 + $0x8] sm:$0xff]
      %v333 = vld [vmem:[%s309 + $0x10] sm:$0xff]
      %v334 = vld [vmem:[%s309 + $0x18] sm:$0xff]
      %v335 = vld [vmem:[%s315] sm:$0xff]
      %v336 = vld [vmem:[%s315 + $0x8] sm:$0xff]
      %v337 = vld [vmem:[%s315 + $0x10] sm:$0xff]
      %v338 = vld [vmem:[%s320] sm:$0xff]
      %v339 = vld [vmem:[%s320 + $0x8] sm:$0xff]
      %v340 = vld [vmem:[%s320 + $0x10] sm:$0xff]
      %v341 = vld [vmem:[%s3] sm:$0xff]
      %v342 = vld [vmem:[%s3 + $0x8] sm:$0xff]
      %v343 = vld [vmem:[%s3 + $0x10] sm:$0xff]
      %v344 = vld [vmem:[%s3 + $0x18] sm:$0xff]
      %v345 = vld [vmem:[%s4] sm:$0xff]
      %v346 = vld [vmem:[%s4 + $0x8] sm:$0xff]
      %v347 = vld [vmem:[%s4 + $0x10] sm:$0xff]
      %v348 = vld [vmem:[%s4 + $0x18] sm:$0xff]
      %vm349 = vcmask 261120
      %v351 = vsel %vm349, %v331, 0
      %v354 = vsel %vm349, %v332, 0
      %v357 = vsel %vm349, %v333, 0
      %v360 = vsel %vm349, %v334, 0
      %362 = vmatprep.subr.mxu0 0.0
      %363 = vmatpush1.msra.mxu0 %v341
      %364 = vmatprep.subr.mxu0 0.0
      %365 = vmatpush1.msra.mxu0 %v342
      %366 = vmatprep.subr.mxu0 0.0
      %367 = vmatpush1.msra.mxu0 %v343
      %368 = vmatprep.subr.mxu0 0.0
      %369 = vmatpush1.msra.mxu0 %v344
      %370 = vmatprep.subr.mxu0 0.0
      %371 = vmatpush1.msra.mxu0 0.0
      %372 = vmatprep.subr.mxu0 0.0
      %373 = vmatpush1.msra.mxu0 0.0
      %374 = vmatprep.subr.mxu0 0.0
      %375 = vmatpush1.msra.mxu0 0.0
      %376 = vmatprep.subr.mxu0 0.0
      %377 = vmatpush1.msra.mxu0 0.0
      %378 = vmatprep.subr.mxu0 0.0
      %379 = vmatpush1.msra.mxu0 0.0
      %380 = vmatprep.subr.mxu0 0.0
      %381 = vmatpush1.msra.mxu0 0.0
      %382 = vmatprep.subr.mxu0 0.0
      %383 = vmatpush1.msra.mxu0 0.0
      %384 = vmatprep.subr.mxu0 0.0
      %385 = vmatpush1.msra.mxu0 0.0
      %386 = vmatprep.subr.mxu0 0.0
      %387 = vmatpush1.msra.mxu0 0.0
      %388 = vmatprep.subr.mxu0 0.0
      %389 = vmatpush1.msra.mxu0 0.0
      %390 = vmatprep.subr.mxu0 0.0
      %391 = vmatpush1.msra.mxu0 0.0
      %392 = vmatprep.subr.mxu0 0.0
      %393 = vmatpush1.msra.mxu0 0.0
      %394 = vmatprep.subr.mxu0 0.0
      %395 = vmatpush1.msra.mxu0 0.0
      %396 = vmatprep.subr.mxu0 0.0
      %397 = vmatpush1.msra.mxu0 0.0
      %398 = vmatprep.subr.mxu0 0.0
      %399 = vmatpush1.msra.mxu0 0.0
      %400 = vmatprep.subr.mxu0 0.0
      %401 = vmatpush1.msra.mxu0 0.0
      %402 = vmatprep.subr.mxu0 0.0
      %403 = vmatpush1.msra.mxu0 0.0
      %404 = vmatprep.subr.mxu0 0.0
      %405 = vmatpush1.msra.mxu0 0.0
      %406 = vmatprep.subr.mxu0 0.0
      %407 = vmatpush1.msra.mxu0 0.0
      %408 = vmatprep.subr.mxu0 0.0
      %409 = vmatpush1.msra.mxu0 0.0
      %410 = vmatprep.subr.mxu0 0.0
      %411 = vmatpush1.msra.mxu0 0.0
      %412 = vmatprep.subr.mxu0 0.0
      %413 = vmatpush1.msra.mxu0 0.0
      %414 = vmatprep.subr.mxu0 0.0
      %415 = vmatpush1.msra.mxu0 0.0
      %416 = vmatprep.subr.mxu0 0.0
      %417 = vmatpush1.msra.mxu0 0.0
      %418 = vmatprep.subr.mxu0 0.0
      %419 = vmatpush1.msra.mxu0 0.0
      %420 = vmatprep.subr.mxu0 0.0
      %421 = vmatpush1.msra.mxu0 0.0
      %422 = vmatprep.subr.mxu0 0.0
      %423 = vmatpush1.msra.mxu0 0.0
      %424 = vmatprep.subr.mxu0 0.0
      %425 = vmatpush1.msra.mxu0 0.0
      %426 = vmatprep.mubr.f32.mxu0 0.0
      %427 = vmatmul.mubr.f32.gmra.mrb[0].mxu0 %v351
      %v428 = vpop.f32.mrb[0].mxu0
      %v429 = vadd.f32 0.0, %v428
      %v430 = vpop.f32.mrb[0].mxu0
      %431 = vmatprep.mubr.f32.mxu0 0.0
      %432 = vmatmul.mubr.f32.gmra.mrb[0].mxu0 %v354
      %v433 = vpop.f32.mrb[0].mxu0
      %v434 = vadd.f32 0.0, %v433
      %v435 = vpop.f32.mrb[0].mxu0
      %436 = vmatprep.mubr.f32.mxu0 0.0
      %437 = vmatmul.mubr.f32.gmra.mrb[0].mxu0 %v357
      %v438 = vpop.f32.mrb[0].mxu0
      %v439 = vadd.f32 0.0, %v438
      %v440 = vpop.f32.mrb[0].mxu0
      %441 = vmatprep.mubr.f32.mxu0 0.0
      %442 = vmatmul.mubr.f32.gmra.mrb[0].mxu0 %v360
      %v443 = vpop.f32.mrb[0].mxu0
      %v444 = vadd.f32 0.0, %v443
      %v445 = vpop.f32.mrb[0].mxu0
      %446 = vdwg.mxu0
      %v447 = vmul.f32 %v429, 0.25
      %v448 = vmul.f32 %v434, 0.25
      %v449 = vmul.f32 %v439, 0.25
      %v450 = vmul.f32 %v444, 0.25
      %vm451 = vcmask 130048
      %v453 = vsel %vm451, %v447, 0
      %v456 = vsel %vm451, %v448, 0
      %v459 = vsel %vm451, %v449, 0
      %v462 = vsel %vm451, %v450, 0
      %v465 = vsel %vm451, %v335, 0
      %v468 = vsel %vm451, %v336, 0
      %v471 = vsel %vm451, %v337, 0
      %473 = vmatprep.subr.mxu0 0.0
      %474 = vmatpush1.xpose.msra.mxu0 %v465
      %475 = vmatprep.subr.mxu0 0.0
      %476 = vmatpush1.xpose.msra.mxu0 %v468
      %477 = vmatprep.subr.mxu0 0.0
      %478 = vmatpush1.xpose.msra.mxu0 %v471
      %479 = vmatprep.subr.mxu0 0.0
      %480 = vmatpush1.xpose.msra.mxu0 0.0
      %481 = vmatprep.subr.mxu0 0.0
      %482 = vmatpush1.xpose.msra.mxu0 0.0
      %483 = vmatprep.subr.mxu0 0.0
      %484 = vmatpush1.xpose.msra.mxu0 0.0
      %485 = vmatprep.subr.mxu0 0.0
      %486 = vmatpush1.xpose.msra.mxu0 0.0
      %487 = vmatprep.subr.mxu0 0.0
      %488 = vmatpush1.xpose.msra.mxu0 0.0
      %489 = vmatprep.subr.mxu0 0.0
      %490 = vmatpush1.xpose.msra.mxu0 0.0
      %491 = vmatprep.subr.mxu0 0.0
      %492 = vmatpush1.xpose.msra.mxu0 0.0
      %493 = vmatprep.subr.mxu0 0.0
      %494 = vmatpush1.xpose.msra.mxu0 0.0
      %495 = vmatprep.subr.mxu0 0.0
      %496 = vmatpush1.xpose.msra.mxu0 0.0
      %497 = vmatprep.subr.mxu0 0.0
      %498 = vmatpush1.xpose.msra.mxu0 0.0
      %499 = vmatprep.subr.mxu0 0.0
      %500 = vmatpush1.xpose.msra.mxu0 0.0
      %501 = vmatprep.subr.mxu0 0.0
      %502 = vmatpush1.xpose.msra.mxu0 0.0
      %503 = vmatprep.subr.mxu0 0.0
      %504 = vmatpush1.xpose.msra.mxu0 0.0
      %505 = vmatprep.subr.mxu0 0.0
      %506 = vmatpush1.xpose.msra.mxu0 0.0
      %507 = vmatprep.subr.mxu0 0.0
      %508 = vmatpush1.xpose.msra.mxu0 0.0
      %509 = vmatprep.subr.mxu0 0.0
      %510 = vmatpush1.xpose.msra.mxu0 0.0
      %511 = vmatprep.subr.mxu0 0.0
      %512 = vmatpush1.xpose.msra.mxu0 0.0
      %513 = vmatprep.subr.mxu0 0.0
      %514 = vmatpush1.xpose.msra.mxu0 0.0
      %515 = vmatprep.subr.mxu0 0.0
      %516 = vmatpush1.xpose.msra.mxu0 0.0
      %517 = vmatprep.subr.mxu0 0.0
      %518 = vmatpush1.xpose.msra.mxu0 0.0
      %519 = vmatprep.subr.mxu0 0.0
      %520 = vmatpush1.xpose.msra.mxu0 0.0
      %521 = vmatprep.subr.mxu0 0.0
      %522 = vmatpush1.xpose.msra.mxu0 0.0
      %523 = vmatprep.subr.mxu0 0.0
      %524 = vmatpush1.xpose.msra.mxu0 0.0
      %525 = vmatprep.subr.mxu0 0.0
      %526 = vmatpush1.xpose.msra.mxu0 0.0
      %527 = vmatprep.subr.mxu0 0.0
      %528 = vmatpush1.xpose.msra.mxu0 0.0
      %529 = vmatprep.subr.mxu0 0.0
      %530 = vmatpush1.xpose.msra.mxu0 0.0
      %531 = vmatprep.subr.mxu0 0.0
      %532 = vmatpush1.xpose.msra.mxu0 0.0
      %533 = vmatprep.subr.mxu0 0.0
      %534 = vmatpush1.xpose.msra.mxu0 0.0
      %535 = vmatprep.subr.mxu0 0.0
      %536 = vmatpush1.xpose.msra.mxu0 0.0
      %537 = vmatprep.mubr.f32.mxu0 0.0
      %538 = vmatmul.mubr.f32.gmra.mrb[0].mxu0 %v453
      %v539 = vpop.f32.mrb[0].mxu0
      %v540 = vadd.f32 0.0, %v539
      %v541 = vpop.f32.mrb[0].mxu0
      %542 = vmatprep.mubr.f32.mxu0 0.0
      %543 = vmatmul.mubr.f32.gmra.mrb[0].mxu0 %v456
      %v544 = vpop.f32.mrb[0].mxu0
      %v545 = vadd.f32 0.0, %v544
      %v546 = vpop.f32.mrb[0].mxu0
      %547 = vmatprep.mubr.f32.mxu0 0.0
      %548 = vmatmul.mubr.f32.gmra.mrb[0].mxu0 %v459
      %v549 = vpop.f32.mrb[0].mxu0
      %v550 = vadd.f32 0.0, %v549
      %v551 = vpop.f32.mrb[0].mxu0
      %552 = vmatprep.mubr.f32.mxu0 0.0
      %553 = vmatmul.mubr.f32.gmra.mrb[0].mxu0 %v462
      %v554 = vpop.f32.mrb[0].mxu0
      %v555 = vadd.f32 0.0, %v554
      %v556 = vpop.f32.mrb[0].mxu0
      %557 = vdwg.mxu0
      %vm558 = vcmask 195584
      %v559 = vsel %vm558, %v540, -inf
      %560 = vmax.xlane.f32.xlu0 %v559
      %v561 = vpop.xlane.xlu0 %560
      %v562 = vsel %vm558, %v545, -inf
      %563 = vmax.xlane.f32.xlu0 %v562
      %v564 = vpop.xlane.xlu0 %563
      %v565 = vsel %vm558, %v550, -inf
      %566 = vmax.xlane.f32.xlu0 %v565
      %v567 = vpop.xlane.xlu0 %566
      %v568 = vsel %vm558, %v555, -inf
      %569 = vmax.xlane.f32.xlu0 %v568
      %v570 = vpop.xlane.xlu0 %569
      %v571 = vsub.f32 %v540, %v561
      %v572 = vsub.f32 %v545, %v564
      %v573 = vsub.f32 %v550, %v567
      %v574 = vsub.f32 %v555, %v570
      %v575 = vmul.f32 %v571, 1.442695
      %v576 = vpow.pop %v575
      %v577 = vmul.f32 %v572, 1.442695
      %v578 = vpow.pop %v577
      %v579 = vmul.f32 %v573, 1.442695
      %v580 = vpow.pop %v579
      %v581 = vmul.f32 %v574, 1.442695
      %v582 = vpow.pop %v581
      %v583 = vsel %vm558, %v576, 0.0
      %584 = vadd.xlane.f32.xlu0 %v583
      %v585 = vpop.xlane.xlu0 %584
      %v586 = vsel %vm558, %v578, 0.0
      %587 = vadd.xlane.f32.xlu0 %v586
      %v588 = vpop.xlane.xlu0 %587
      %v589 = vsel %vm558, %v580, 0.0
      %590 = vadd.xlane.f32.xlu0 %v589
      %v591 = vpop.xlane.xlu0 %590
      %v592 = vsel %vm558, %v582, 0.0
      %593 = vadd.xlane.f32.xlu0 %v592
      %v594 = vpop.xlane.xlu0 %593
      %v596 = vsel %vm558, %v576, 0
      %v599 = vsel %vm558, %v578, 0
      %v602 = vsel %vm558, %v580, 0
      %v605 = vsel %vm558, %v582, 0
      %607 = vmatprep.subr.mxu0 0.0
      %608 = vmatpush1.msra.mxu0 %v338
      %609 = vmatprep.subr.mxu0 0.0
      %610 = vmatpush1.msra.mxu0 %v339
      %611 = vmatprep.subr.mxu0 0.0
      %612 = vmatpush1.msra.mxu0 %v340
      %613 = vmatprep.subr.mxu0 0.0
      %614 = vmatpush1.msra.mxu0 0.0
      %615 = vmatprep.subr.mxu0 0.0
      %616 = vmatpush1.msra.mxu0 0.0
      %617 = vmatprep.subr.mxu0 0.0
      %618 = vmatpush1.msra.mxu0 0.0
      %619 = vmatprep.subr.mxu0 0.0
      %620 = vmatpush1.msra.mxu0 0.0
      %621 = vmatprep.subr.mxu0 0.0
      %622 = vmatpush1.msra.mxu0 0.0
      %623 = vmatprep.subr.mxu0 0.0
      %624 = vmatpush1.msra.mxu0 0.0
      %625 = vmatprep.subr.mxu0 0.0
      %626 = vmatpush1.msra.mxu0 0.0
      %627 = vmatprep.subr.mxu0 0.0
      %628 = vmatpush1.msra.mxu0 0.0
      %629 = vmatprep.subr.mxu0 0.0
      %630 = vmatpush1.msra.mxu0 0.0
      %631 = vmatprep.subr.mxu0 0.0
      %632 = vmatpush1.msra.mxu0 0.0
      %633 = vmatprep.subr.mxu0 0.0
      %634 = vmatpush1.msra.mxu0 0.0
      %635 = vmatprep.subr.mxu0 0.0
      %636 = vmatpush1.msra.mxu0 0.0
      %637 = vmatprep.subr.mxu0 0.0
      %638 = vmatpush1.msra.mxu0 0.0
      %639 = vmatprep.subr.mxu0 0.0
      %640 = vmatpush1.msra.mxu0 0.0
      %641 = vmatprep.subr.mxu0 0.0
      %642 = vmatpush1.msra.mxu0 0.0
      %643 = vmatprep.subr.mxu0 0.0
      %644 = vmatpush1.msra.mxu0 0.0
      %645 = vmatprep.subr.mxu0 0.0
      %646 = vmatpush1.msra.mxu0 0.0
      %647 = vmatprep.subr.mxu0 0.0
      %648 = vmatpush1.msra.mxu0 0.0
      %649 = vmatprep.subr.mxu0 0.0
      %650 = vmatpush1.msra.mxu0 0.0
      %651 = vmatprep.subr.mxu0 0.0
      %652 = vmatpush1.msra.mxu0 0.0
      %653 = vmatprep.subr.mxu0 0.0
      %654 = vmatpush1.msra.mxu0 0.0
      %655 = vmatprep.subr.mxu0 0.0
      %656 = vmatpush1.msra.mxu0 0.0
      %657 = vmatprep.subr.mxu0 0.0
      %658 = vmatpush1.msra.mxu0 0.0
      %659 = vmatprep.subr.mxu0 0.0
      %660 = vmatpush1.msra.mxu0 0.0
      %661 = vmatprep.subr.mxu0 0.0
      %662 = vmatpush1.msra.mxu0 0.0
      %663 = vmatprep.subr.mxu0 0.0
      %664 = vmatpush1.msra.mxu0 0.0
      %665 = vmatprep.subr.mxu0 0.0
      %666 = vmatpush1.msra.mxu0 0.0
      %667 = vmatprep.subr.mxu0 0.0
      %668 = vmatpush1.msra.mxu0 0.0
      %669 = vmatprep.subr.mxu0 0.0
      %670 = vmatpush1.msra.mxu0 0.0
      %671 = vmatprep.mubr.f32.mxu0 0.0
      %672 = vmatmul.mubr.f32.gmra.mrb[0].mxu0 %v596
      %v673 = vpop.f32.mrb[0].mxu0
      %v674 = vadd.f32 0.0, %v673
      %v675 = vpop.f32.mrb[0].mxu0
      %676 = vmatprep.mubr.f32.mxu0 0.0
      %677 = vmatmul.mubr.f32.gmra.mrb[0].mxu0 %v599
      %v678 = vpop.f32.mrb[0].mxu0
      %v679 = vadd.f32 0.0, %v678
      %v680 = vpop.f32.mrb[0].mxu0
      %681 = vmatprep.mubr.f32.mxu0 0.0
      %682 = vmatmul.mubr.f32.gmra.mrb[0].mxu0 %v602
      %v683 = vpop.f32.mrb[0].mxu0
      %v684 = vadd.f32 0.0, %v683
      %v685 = vpop.f32.mrb[0].mxu0
      %686 = vmatprep.mubr.f32.mxu0 0.0
      %687 = vmatmul.mubr.f32.gmra.mrb[0].mxu0 %v605
      %v688 = vpop.f32.mrb[0].mxu0
      %v689 = vadd.f32 0.0, %v688
      %v690 = vpop.f32.mrb[0].mxu0
      %691 = vdwg.mxu0
      %v692 = vrcp.pop %v585
      %v693 = vrcp.pop %v588
      %v694 = vrcp.pop %v591
      %v695 = vrcp.pop %v594
      %v696 = vmul.f32 %v674, %v692
      %v697 = vmul.f32 %v679, %v693
      %v698 = vmul.f32 %v684, %v694
      %v699 = vmul.f32 %v689, %v695
      %700 = vst.msk [vmem:[#allocation2] sm:$0xff] %vm451, %v696
      %701 = vst.msk [vmem:[#allocation2 + $0x8] sm:$0xff] %vm451, %v697
      %702 = vst.msk [vmem:[#allocation2 + $0x10] sm:$0xff] %vm451, %v698
      %703 = vst.msk [vmem:[#allocation2 + $0x18] sm:$0xff] %vm451, %v699
      %704 = vrot.lane.b32.xlu0 %v447, 112
      %v705 = vpop.permute.xlu0 %704
      %706 = vrot.lane.b32.xlu0 %v448, 112
      %v707 = vpop.permute.xlu0 %706
      %708 = vrot.lane.b32.xlu0 %v449, 112
      %v709 = vpop.permute.xlu0 %708
      %710 = vrot.lane.b32.xlu0 %v450, 112
      %v711 = vpop.permute.xlu0 %710
      %712 = vrot.lane.b32.xlu0 %v335, 112
      %v713 = vpop.permute.xlu0 %712
      %714 = vrot.lane.b32.xlu0 %v336, 112
      %v715 = vpop.permute.xlu0 %714
      %716 = vrot.lane.b32.xlu0 %v337, 112
      %v717 = vpop.permute.xlu0 %716
      %v718 = vsel %vm451, %v705, 0
      %v720 = vsel %vm451, %v707, 0
      %v722 = vsel %vm451, %v709, 0
      %v724 = vsel %vm451, %v711, 0
      %v726 = vsel %vm451, %v713, 0
      %v728 = vsel %vm451, %v715, 0
      %v730 = vsel %vm451, %v717, 0
      %732 = vmatprep.subr.mxu0 0.0
      %733 = vmatpush1.xpose.msra.mxu0 %v726
      %734 = vmatprep.subr.mxu0 0.0
      %735 = vmatpush1.xpose.msra.mxu0 %v728
      %736 = vmatprep.subr.mxu0 0.0
      %737 = vmatpush1.xpose.msra.mxu0 %v730
      %738 = vmatprep.subr.mxu0 0.0
      %739 = vmatpush1.xpose.msra.mxu0 0.0
      %740 = vmatprep.subr.mxu0 0.0
      %741 = vmatpush1.xpose.msra.mxu0 0.0
      %742 = vmatprep.subr.mxu0 0.0
      %743 = vmatpush1.xpose.msra.mxu0 0.0
      %744 = vmatprep.subr.mxu0 0.0
      %745 = vmatpush1.xpose.msra.mxu0 0.0
      %746 = vmatprep.subr.mxu0 0.0
      %747 = vmatpush1.xpose.msra.mxu0 0.0
      %748 = vmatprep.subr.mxu0 0.0
      %749 = vmatpush1.xpose.msra.mxu0 0.0
      %750 = vmatprep.subr.mxu0 0.0
      %751 = vmatpush1.xpose.msra.mxu0 0.0
      %752 = vmatprep.subr.mxu0 0.0
      %753 = vmatpush1.xpose.msra.mxu0 0.0
      %754 = vmatprep.subr.mxu0 0.0
      %755 = vmatpush1.xpose.msra.mxu0 0.0
      %756 = vmatprep.subr.mxu0 0.0
      %757 = vmatpush1.xpose.msra.mxu0 0.0
      %758 = vmatprep.subr.mxu0 0.0
      %759 = vmatpush1.xpose.msra.mxu0 0.0
      %760 = vmatprep.subr.mxu0 0.0
      %761 = vmatpush1.xpose.msra.mxu0 0.0
      %762 = vmatprep.subr.mxu0 0.0
      %763 = vmatpush1.xpose.msra.mxu0 0.0
      %764 = vmatprep.subr.mxu0 0.0
      %765 = vmatpush1.xpose.msra.mxu0 0.0
      %766 = vmatprep.subr.mxu0 0.0
      %767 = vmatpush1.xpose.msra.mxu0 0.0
      %768 = vmatprep.subr.mxu0 0.0
      %769 = vmatpush1.xpose.msra.mxu0 0.0
      %770 = vmatprep.subr.mxu0 0.0
      %771 = vmatpush1.xpose.msra.mxu0 0.0
      %772 = vmatprep.subr.mxu0 0.0
      %773 = vmatpush1.xpose.msra.mxu0 0.0
      %774 = vmatprep.subr.mxu0 0.0
      %775 = vmatpush1.xpose.msra.mxu0 0.0
      %776 = vmatprep.subr.mxu0 0.0
      %777 = vmatpush1.xpose.msra.mxu0 0.0
      %778 = vmatprep.subr.mxu0 0.0
      %779 = vmatpush1.xpose.msra.mxu0 0.0
      %780 = vmatprep.subr.mxu0 0.0
      %781 = vmatpush1.xpose.msra.mxu0 0.0
      %782 = vmatprep.subr.mxu0 0.0
      %783 = vmatpush1.xpose.msra.mxu0 0.0
      %784 = vmatprep.subr.mxu0 0.0
      %785 = vmatpush1.xpose.msra.mxu0 0.0
      %786 = vmatprep.subr.mxu0 0.0
      %787 = vmatpush1.xpose.msra.mxu0 0.0
      %788 = vmatprep.subr.mxu0 0.0
      %789 = vmatpush1.xpose.msra.mxu0 0.0
      %790 = vmatprep.subr.mxu0 0.0
      %791 = vmatpush1.xpose.msra.mxu0 0.0
      %792 = vmatprep.subr.mxu0 0.0
      %793 = vmatpush1.xpose.msra.mxu0 0.0
      %794 = vmatprep.subr.mxu0 0.0
      %795 = vmatpush1.xpose.msra.mxu0 0.0
      %796 = vmatprep.mubr.f32.mxu0 0.0
      %797 = vmatmul.mubr.f32.gmra.mrb[0].mxu0 %v718
      %v798 = vpop.f32.mrb[0].mxu0
      %v799 = vadd.f32 0.0, %v798
      %v800 = vpop.f32.mrb[0].mxu0
      %801 = vmatprep.mubr.f32.mxu0 0.0
      %802 = vmatmul.mubr.f32.gmra.mrb[0].mxu0 %v720
      %v803 = vpop.f32.mrb[0].mxu0
      %v804 = vadd.f32 0.0, %v803
      %v805 = vpop.f32.mrb[0].mxu0
      %806 = vmatprep.mubr.f32.mxu0 0.0
      %807 = vmatmul.mubr.f32.gmra.mrb[0].mxu0 %v722
      %v808 = vpop.f32.mrb[0].mxu0
      %v809 = vadd.f32 0.0, %v808
      %v810 = vpop.f32.mrb[0].mxu0
      %811 = vmatprep.mubr.f32.mxu0 0.0
      %812 = vmatmul.mubr.f32.gmra.mrb[0].mxu0 %v724
      %v813 = vpop.f32.mrb[0].mxu0
      %v814 = vadd.f32 0.0, %v813
      %v815 = vpop.f32.mrb[0].mxu0
      %816 = vdwg.mxu0
      %v817 = vsel %vm558, %v799, -inf
      %818 = vmax.xlane.f32.xlu0 %v817
      %v819 = vpop.xlane.xlu0 %818
      %v820 = vsel %vm558, %v804, -inf
      %821 = vmax.xlane.f32.xlu0 %v820
      %v822 = vpop.xlane.xlu0 %821
      %v823 = vsel %vm558, %v809, -inf
      %824 = vmax.xlane.f32.xlu0 %v823
      %v825 = vpop.xlane.xlu0 %824
      %v826 = vsel %vm558, %v814, -inf
      %827 = vmax.xlane.f32.xlu0 %v826
      %v828 = vpop.xlane.xlu0 %827
      %v829 = vsub.f32 %v799, %v819
      %v830 = vsub.f32 %v804, %v822
      %v831 = vsub.f32 %v809, %v825
      %v832 = vsub.f32 %v814, %v828
      %v833 = vmul.f32 %v829, 1.442695
      %v834 = vpow.pop %v833
      %v835 = vmul.f32 %v830, 1.442695
      %v836 = vpow.pop %v835
      %v837 = vmul.f32 %v831, 1.442695
      %v838 = vpow.pop %v837
      %v839 = vmul.f32 %v832, 1.442695
      %v840 = vpow.pop %v839
      %v841 = vsel %vm558, %v834, 0.0
      %842 = vadd.xlane.f32.xlu0 %v841
      %v843 = vpop.xlane.xlu0 %842
      %v844 = vsel %vm558, %v836, 0.0
      %845 = vadd.xlane.f32.xlu0 %v844
      %v846 = vpop.xlane.xlu0 %845
      %v847 = vsel %vm558, %v838, 0.0
      %848 = vadd.xlane.f32.xlu0 %v847
      %v849 = vpop.xlane.xlu0 %848
      %v850 = vsel %vm558, %v840, 0.0
      %851 = vadd.xlane.f32.xlu0 %v850
      %v852 = vpop.xlane.xlu0 %851
      %856 = vrot.lane.b32.xlu0 %v338, 112
      %v857 = vpop.permute.xlu0 %856
      %858 = vrot.lane.b32.xlu0 %v339, 112
      %v859 = vpop.permute.xlu0 %858
      %860 = vrot.lane.b32.xlu0 %v340, 112
      %v861 = vpop.permute.xlu0 %860
      %v866 = vsel %vm558, %v834, 0
      %v869 = vsel %vm558, %v836, 0
      %v872 = vsel %vm558, %v838, 0
      %v875 = vsel %vm558, %v840, 0
      %877 = vmatprep.subr.mxu0 0.0
      %878 = vmatpush1.msra.mxu0 %v857
      %879 = vmatprep.subr.mxu0 0.0
      %880 = vmatpush1.msra.mxu0 %v859
      %881 = vmatprep.subr.mxu0 0.0
      %882 = vmatpush1.msra.mxu0 %v861
      %883 = vmatprep.subr.mxu0 0.0
      %884 = vmatpush1.msra.mxu0 0.0
      %885 = vmatprep.subr.mxu0 0.0
      %886 = vmatpush1.msra.mxu0 0.0
      %887 = vmatprep.subr.mxu0 0.0
      %888 = vmatpush1.msra.mxu0 0.0
      %889 = vmatprep.subr.mxu0 0.0
      %890 = vmatpush1.msra.mxu0 0.0
      %891 = vmatprep.subr.mxu0 0.0
      %892 = vmatpush1.msra.mxu0 0.0
      %893 = vmatprep.subr.mxu0 0.0
      %894 = vmatpush1.msra.mxu0 0.0
      %895 = vmatprep.subr.mxu0 0.0
      %896 = vmatpush1.msra.mxu0 0.0
      %897 = vmatprep.subr.mxu0 0.0
      %898 = vmatpush1.msra.mxu0 0.0
      %899 = vmatprep.subr.mxu0 0.0
      %900 = vmatpush1.msra.mxu0 0.0
      %901 = vmatprep.subr.mxu0 0.0
      %902 = vmatpush1.msra.mxu0 0.0
      %903 = vmatprep.subr.mxu0 0.0
      %904 = vmatpush1.msra.mxu0 0.0
      %905 = vmatprep.subr.mxu0 0.0
      %906 = vmatpush1.msra.mxu0 0.0
      %907 = vmatprep.subr.mxu0 0.0
      %908 = vmatpush1.msra.mxu0 0.0
      %909 = vmatprep.subr.mxu0 0.0
      %910 = vmatpush1.msra.mxu0 0.0
      %911 = vmatprep.subr.mxu0 0.0
      %912 = vmatpush1.msra.mxu0 0.0
      %913 = vmatprep.subr.mxu0 0.0
      %914 = vmatpush1.msra.mxu0 0.0
      %915 = vmatprep.subr.mxu0 0.0
      %916 = vmatpush1.msra.mxu0 0.0
      %917 = vmatprep.subr.mxu0 0.0
      %918 = vmatpush1.msra.mxu0 0.0
      %919 = vmatprep.subr.mxu0 0.0
      %920 = vmatpush1.msra.mxu0 0.0
      %921 = vmatprep.subr.mxu0 0.0
      %922 = vmatpush1.msra.mxu0 0.0
      %923 = vmatprep.subr.mxu0 0.0
      %924 = vmatpush1.msra.mxu0 0.0
      %925 = vmatprep.subr.mxu0 0.0
      %926 = vmatpush1.msra.mxu0 0.0
      %927 = vmatprep.subr.mxu0 0.0
      %928 = vmatpush1.msra.mxu0 0.0
      %929 = vmatprep.subr.mxu0 0.0
      %930 = vmatpush1.msra.mxu0 0.0
      %931 = vmatprep.subr.mxu0 0.0
      %932 = vmatpush1.msra.mxu0 0.0
      %933 = vmatprep.subr.mxu0 0.0
      %934 = vmatpush1.msra.mxu0 0.0
      %935 = vmatprep.subr.mxu0 0.0
      %936 = vmatpush1.msra.mxu0 0.0
      %937 = vmatprep.subr.mxu0 0.0
      %938 = vmatpush1.msra.mxu0 0.0
      %939 = vmatprep.subr.mxu0 0.0
      %940 = vmatpush1.msra.mxu0 0.0
      %941 = vmatprep.mubr.f32.mxu0 0.0
      %942 = vmatmul.mubr.f32.gmra.mrb[0].mxu0 %v866
      %v943 = vpop.f32.mrb[0].mxu0
      %v944 = vadd.f32 0.0, %v943
      %v945 = vpop.f32.mrb[0].mxu0
      %946 = vmatprep.mubr.f32.mxu0 0.0
      %947 = vmatmul.mubr.f32.gmra.mrb[0].mxu0 %v869
      %v948 = vpop.f32.mrb[0].mxu0
      %v949 = vadd.f32 0.0, %v948
      %v950 = vpop.f32.mrb[0].mxu0
      %951 = vmatprep.mubr.f32.mxu0 0.0
      %952 = vmatmul.mubr.f32.gmra.mrb[0].mxu0 %v872
      %v953 = vpop.f32.mrb[0].mxu0
      %v954 = vadd.f32 0.0, %v953
      %v955 = vpop.f32.mrb[0].mxu0
      %956 = vmatprep.mubr.f32.mxu0 0.0
      %957 = vmatmul.mubr.f32.gmra.mrb[0].mxu0 %v875
      %v958 = vpop.f32.mrb[0].mxu0
      %v959 = vadd.f32 0.0, %v958
      %v960 = vpop.f32.mrb[0].mxu0
      %961 = vdwg.mxu0
      %v962 = vrcp.pop %v843
      %v963 = vrcp.pop %v846
      %v964 = vrcp.pop %v849
      %v965 = vrcp.pop %v852
      %v966 = vmul.f32 %v944, %v962
      %v967 = vmul.f32 %v949, %v963
      %v968 = vmul.f32 %v954, %v964
      %v969 = vmul.f32 %v959, %v965
      %974 = vrot.lane.b32.xlu0 %v966, 16
      %v975 = vpop.permute.xlu0 %974
      %976 = vrot.lane.b32.xlu0 %v967, 16
      %v977 = vpop.permute.xlu0 %976
      %978 = vrot.lane.b32.xlu0 %v968, 16
      %v979 = vpop.permute.xlu0 %978
      %980 = vrot.lane.b32.xlu0 %v969, 16
      %v981 = vpop.permute.xlu0 %980
      %vm986 = vcmask 261248
      %987 = vst.msk [vmem:[#allocation2] sm:$0xff] %vm986, %v975
      %988 = vst.msk [vmem:[#allocation2 + $0x8] sm:$0xff] %vm986, %v977
      %989 = vst.msk [vmem:[#allocation2 + $0x10] sm:$0xff] %vm986, %v979
      %990 = vst.msk [vmem:[#allocation2 + $0x18] sm:$0xff] %vm986, %v981
      %v991 = vld [vmem:[#allocation2] sm:$0xff]
      %v992 = vld [vmem:[#allocation2 + $0x8] sm:$0xff]
      %v993 = vld [vmem:[#allocation2 + $0x10] sm:$0xff]
      %v994 = vld [vmem:[#allocation2 + $0x18] sm:$0xff]
      %v995 = vld [vmem:[%s5] sm:$0x1]
      %v997 = vlaneseq
      %v998 = vshrl.u32 %v997, 7
      %v999 = vsub.s32 0, %v998
      %v1000 = vrot.slane %v995, %v999
      %v1003 = vsel %vm349, %v991, 0
      %v1006 = vsel %vm349, %v992, 0
      %v1009 = vsel %vm349, %v993, 0
      %v1012 = vsel %vm349, %v994, 0
      %1014 = vmatprep.subr.mxu0 0.0
      %1015 = vmatpush1.msra.mxu0 %v345
      %1016 = vmatprep.subr.mxu0 0.0
      %1017 = vmatpush1.msra.mxu0 %v346
      %1018 = vmatprep.subr.mxu0 0.0
      %1019 = vmatpush1.msra.mxu0 %v347
      %1020 = vmatprep.subr.mxu0 0.0
      %1021 = vmatpush1.msra.mxu0 %v348
      %1022 = vmatprep.subr.mxu0 0.0
      %1023 = vmatpush1.msra.mxu0 0.0
      %1024 = vmatprep.subr.mxu0 0.0
      %1025 = vmatpush1.msra.mxu0 0.0
      %1026 = vmatprep.subr.mxu0 0.0
      %1027 = vmatpush1.msra.mxu0 0.0
      %1028 = vmatprep.subr.mxu0 0.0
      %1029 = vmatpush1.msra.mxu0 0.0
      %1030 = vmatprep.subr.mxu0 0.0
      %1031 = vmatpush1.msra.mxu0 0.0
      %1032 = vmatprep.subr.mxu0 0.0
      %1033 = vmatpush1.msra.mxu0 0.0
      %1034 = vmatprep.subr.mxu0 0.0
      %1035 = vmatpush1.msra.mxu0 0.0
      %1036 = vmatprep.subr.mxu0 0.0
      %1037 = vmatpush1.msra.mxu0 0.0
      %1038 = vmatprep.subr.mxu0 0.0
      %1039 = vmatpush1.msra.mxu0 0.0
      %1040 = vmatprep.subr.mxu0 0.0
      %1041 = vmatpush1.msra.mxu0 0.0
      %1042 = vmatprep.subr.mxu0 0.0
      %1043 = vmatpush1.msra.mxu0 0.0
      %1044 = vmatprep.subr.mxu0 0.0
      %1045 = vmatpush1.msra.mxu0 0.0
      %1046 = vmatprep.subr.mxu0 0.0
      %1047 = vmatpush1.msra.mxu0 0.0
      %1048 = vmatprep.subr.mxu0 0.0
      %1049 = vmatpush1.msra.mxu0 0.0
      %1050 = vmatprep.subr.mxu0 0.0
      %1051 = vmatpush1.msra.mxu0 0.0
      %1052 = vmatprep.subr.mxu0 0.0
      %1053 = vmatpush1.msra.mxu0 0.0
      %1054 = vmatprep.subr.mxu0 0.0
      %1055 = vmatpush1.msra.mxu0 0.0
      %1056 = vmatprep.subr.mxu0 0.0
      %1057 = vmatpush1.msra.mxu0 0.0
      %1058 = vmatprep.subr.mxu0 0.0
      %1059 = vmatpush1.msra.mxu0 0.0
      %1060 = vmatprep.subr.mxu0 0.0
      %1061 = vmatpush1.msra.mxu0 0.0
      %1062 = vmatprep.subr.mxu0 0.0
      %1063 = vmatpush1.msra.mxu0 0.0
      %1064 = vmatprep.subr.mxu0 0.0
      %1065 = vmatpush1.msra.mxu0 0.0
      %1066 = vmatprep.subr.mxu0 0.0
      %1067 = vmatpush1.msra.mxu0 0.0
      %1068 = vmatprep.subr.mxu0 0.0
      %1069 = vmatpush1.msra.mxu0 0.0
      %1070 = vmatprep.subr.mxu0 0.0
      %1071 = vmatpush1.msra.mxu0 0.0
      %1072 = vmatprep.subr.mxu0 0.0
      %1073 = vmatpush1.msra.mxu0 0.0
      %1074 = vmatprep.subr.mxu0 0.0
      %1075 = vmatpush1.msra.mxu0 0.0
      %1076 = vmatprep.subr.mxu0 0.0
      %1077 = vmatpush1.msra.mxu0 0.0
      %1078 = vmatprep.mubr.f32.mxu0 0.0
      %1079 = vmatmul.mubr.f32.gmra.mrb[0].mxu0 %v1003
      %v1080 = vpop.f32.mrb[0].mxu0
      %v1081 = vadd.f32 %v1000, %v1080
      %v1082 = vpop.f32.mrb[0].mxu0
      %1083 = vmatprep.mubr.f32.mxu0 0.0
      %1084 = vmatmul.mubr.f32.gmra.mrb[0].mxu0 %v1006
      %v1085 = vpop.f32.mrb[0].mxu0
      %v1086 = vadd.f32 %v1000, %v1085
      %v1087 = vpop.f32.mrb[0].mxu0
      %1088 = vmatprep.mubr.f32.mxu0 0.0
      %1089 = vmatmul.mubr.f32.gmra.mrb[0].mxu0 %v1009
      %v1090 = vpop.f32.mrb[0].mxu0
      %v1091 = vadd.f32 %v1000, %v1090
      %v1092 = vpop.f32.mrb[0].mxu0
      %1093 = vmatprep.mubr.f32.mxu0 0.0
      %1094 = vmatmul.mubr.f32.gmra.mrb[0].mxu0 %v1012
      %v1095 = vpop.f32.mrb[0].mxu0
      %v1096 = vadd.f32 %v1000, %v1095
      %v1097 = vpop.f32.mrb[0].mxu0
      %1098 = vdwg.mxu0
      %1099 = vst.msk [vmem:[%s329] sm:$0xff] %vm349, %v1081
      %1100 = vst.msk [vmem:[%s329 + $0x8] sm:$0xff] %vm349, %v1086
      %1101 = vst.msk [vmem:[%s329 + $0x10] sm:$0xff] %vm349, %v1091
      %1102 = vst.msk [vmem:[%s329 + $0x18] sm:$0xff] %vm349, %v1096
      %s1103 = smul.u32 4, %s22
      %p1104 = scmp.lt.s32.totalorder %s21, 1
      %s1105 = scalar_select %p1104, %s21, 1
      %p1106 = scmp.lt.s32.totalorder %s1103, 7
      %s1107 = scalar_select %p1106, %s1103, 7
      %s1108 = smul.addr %s1105, 8
      %s1109 = sadd.s32 %s1107, %s1108
      %s1110 = smul.addr %s1109, 8
      %s1111 = scalar_lea.vmem %s6, %s1110
      // Predicated region
      $region45: #{tpu_custom_call.1} parent=43 // pred_check
        %p1112 = pneg %p192
      $region46: #{tpu_custom_call.1} parent=43 // pred_check_branch
        %1114 = sbr.rel (%p1112) target = $region48
      $region47: #{tpu_custom_call.1} parent=43 // pred_region
        %s1115 = smul.u32 4, %s22
      $region48: #{tpu_custom_call.1} parent=43 // pred_fallthru
        _
    $region44: #{tpu_custom_call.1} parent=5 // pred_fallthru
      _
    %p1116 = scmp.le.s32.totalorder 2, %s12
    // Predicated region
    $region49: #{tpu_custom_call.1} parent=5 // pred_check
      %p1117 = pneg %p1116
    $region50: #{tpu_custom_call.1} parent=5 // pred_check_branch
      %1119 = sbr.rel (%p1117) target = $region52
    $region51: #{tpu_custom_call.1} parent=5 // pred_region
      %s1120 = ssub.s32 %s12, 2
      // Predicated region
      $region53: #{tpu_custom_call.1} parent=51 // pred_check
        %p1121 = pneg %p198
      $region54: #{tpu_custom_call.1} parent=51 // pred_check_branch
        %1123 = sbr.rel (%p1121) target = $region56
      $region55: #{tpu_custom_call.1} parent=51 // pred_region
        %s1124 = smul.u32 4, %s24
        %p1125 = scmp.lt.s32.totalorder %s23, 1
        %s1126 = scalar_select %p1125, %s23, 1
        %p1127 = scmp.lt.s32.totalorder %s1124, 7
        %s1128 = scalar_select %p1127, %s1124, 7
        %s1129 = smul.addr %s1126, 8
        %s1130 = sadd.s32 %s1128, %s1129
        %s1131 = smul.addr %s1130, 8
        %s1132 = scalar_lea.vmem %s6, %s1131
      $region56: #{tpu_custom_call.1} parent=51 // pred_fallthru
        _
    $region52: #{tpu_custom_call.1} parent=5 // pred_fallthru
      _
  $region6: #{tpu_custom_call.1} parent=0 // loop_footer
    %s16 = sadd.s32 1, %s12
  $region7: #{tpu_custom_call.1} parent=0 // loop_footer_branch
    %11 = sbr.rel target = $region3
  $region8: #{tpu_custom_call.1} parent=0 // loop_exit
    _

</llo_original>
